<compile_context>
chip_gen: v5e
topology: v5e:2x2
jax: 0.10.0
libtpu: 0.0.40
codegen_flags: <defaults>
</compile_context>

<pallas_src>
import functools

import numpy as np

import jax
import jax.numpy as jnp
from jax import lax
from jax.experimental import pallas as pl
from jax.experimental.pallas import tpu as pltpu


_IOU_THRESHOLDS = tuple(float(t) for t in np.linspace(0.5, 0.95, 10))
_NUM_THR = len(_IOU_THRESHOLDS)
_EPS = 1e-7
_LANE = 128
_SUB = 8


def _round_up(x, m):
    return (x + m - 1) // m * m


def _cdiv(a, b):
    return -(-a // b)


def _map_kernel(pred_ref, gt_ref, thr_ref, hits_ref, inter_acc, union_acc,
                *, true_n, true_hw, tile_n, tile_hw, lane_mask_needed):
    i = pl.program_id(0)          # N-block axis ("parallel": no carry across it)
    j = pl.program_id(1)          # HW-block axis (reduction axis, last in grid)
    last_j = pl.num_programs(1) - 1

    # ---- init per-mask partial sums at the first HW block of every N block ----
    @pl.when(j == 0)
    def _():
        inter_acc[...] = jnp.zeros_like(inter_acc)
        union_acc[...] = jnp.zeros_like(union_acc)

    def _accumulate(pb, gb):
        inter_acc[...] += jnp.sum(jnp.logical_and(pb, gb), axis=-1,
                                  keepdims=True, dtype=jnp.float32)
        union_acc[...] += jnp.sum(jnp.logical_or(pb, gb), axis=-1,
                                  keepdims=True, dtype=jnp.float32)

    if lane_mask_needed:
        # Last HW block is partial: mask its out-of-range lanes (unspecified
        # data when no wrapper-side padding is materialized).
        @pl.when(j == last_j)
        def _():
            lane = j * tile_hw + lax.broadcasted_iota(jnp.int32, (1, tile_hw), 1)
            ok = lane < true_hw
            _accumulate(jnp.logical_and(pred_ref[...] >= 0.5, ok),
                        jnp.logical_and(gt_ref[...] >= 0.5, ok))

        @pl.when(j != last_j)
        def _():
            _accumulate(pred_ref[...] >= 0.5, gt_ref[...] >= 0.5)
    else:
        _accumulate(pred_ref[...] >= 0.5, gt_ref[...] >= 0.5)

    # ---- per-N-block finalize: IoU -> per-threshold hit counts ----------------
    @pl.when(j == last_j)
    def _():
        inter = inter_acc[...]
        union = union_acc[...]
        iou = (inter + _EPS) / (union + _EPS)                       # [tile_n, 1]

        # mask rows that belong to the padded part of a partial N block
        row = i * tile_n + lax.broadcasted_iota(jnp.int32, (tile_n, 1), 0)
        valid = row < true_n                                        # [tile_n, 1]

        # thr_ref: lanes 0..9 hold the IoU thresholds, the rest hold 2.0
        # (> any IoU) so they never register a hit.
        hit = jnp.logical_and(valid, iou >= thr_ref[...])           # [tile_n, 128]
        hits_row = jnp.sum(hit, axis=0, keepdims=True, dtype=jnp.float32)  # [1,128]
        hits_ref[...] = jnp.broadcast_to(hits_row.reshape(1, 1, _LANE),
                                         (1, _SUB, _LANE))


def map_metric(predicted_masks, ground_truth_masks, *, tile_n=32,
               block_budget_bytes=2 * 1024 * 1024):
    """predicted_masks / ground_truth_masks: [N, H, W] arrays (any real dtype).

    Returns (map50, map50_95) as float32 scalars.
    """
    assert predicted_masks.shape == ground_truth_masks.shape
    n = predicted_masks.shape[0]
    hw = 1
    for d in predicted_masks.shape[1:]:
        hw *= int(d)

    if n == 0:
        nan = jnp.float32(jnp.nan)
        return nan, nan

    # Keep native dtype: binarization happens in-register inside the kernel.
    pred = predicted_masks.reshape(n, hw)
    gt = ground_truth_masks.reshape(n, hw)
    itemsize = jnp.dtype(pred.dtype).itemsize

    # ---- tile selection (no wrapper-side padding; partial blocks are masked) --
    if n <= tile_n:
        tile_n_eff = n                              # full dim: always legal
    else:
        tile_n_eff = _round_up(tile_n, _SUB)        # sublane-aligned
    num_n_blocks = _cdiv(n, tile_n_eff)

    max_lanes = max(
        _LANE,
        (block_budget_bytes // max(tile_n_eff * itemsize, 1)) // _LANE * _LANE)
    if hw <= max_lanes:
        tile_hw = hw                                # full dim: always legal
    else:
        tile_hw = max_lanes                         # multiple of 128
    num_hw_blocks = _cdiv(hw, tile_hw)
    lane_mask_needed = (hw % tile_hw) != 0

    # Threshold row: lanes 0..9 = thresholds, remaining lanes = 2.0 (never hit).
    thr_np = np.full((1, _LANE), 2.0, dtype=np.float32)
    thr_np[0, :_NUM_THR] = np.asarray(_IOU_THRESHOLDS, dtype=np.float32)
    thr = jnp.asarray(thr_np)

    kernel = functools.partial(
        _map_kernel, true_n=n, true_hw=hw, tile_n=tile_n_eff, tile_hw=tile_hw,
        lane_mask_needed=lane_mask_needed)

    cost = pl.CostEstimate(
        flops=6 * n * hw,
        transcendentals=0,
        bytes_accessed=2 * n * hw * itemsize + num_n_blocks * _SUB * _LANE * 4,
    )

    hits = pl.pallas_call(
        kernel,
        out_shape=jax.ShapeDtypeStruct((num_n_blocks, _SUB, _LANE), jnp.float32),
        grid_spec=pltpu.PrefetchScalarGridSpec(
            num_scalar_prefetch=0,
            grid=(num_n_blocks, num_hw_blocks),
            in_specs=[
                pl.BlockSpec((tile_n_eff, tile_hw), lambda i, j: (i, j)),
                pl.BlockSpec((tile_n_eff, tile_hw), lambda i, j: (i, j)),
                pl.BlockSpec((1, _LANE), lambda i, j: (0, 0)),
            ],
            out_specs=pl.BlockSpec((1, _SUB, _LANE), lambda i, j: (i, 0, 0)),
            scratch_shapes=[
                pltpu.VMEM((tile_n_eff, 1), jnp.float32),   # per-mask intersection
                pltpu.VMEM((tile_n_eff, 1), jnp.float32),   # per-mask union
            ],
        ),
        compiler_params=pltpu.CompilerParams(
            # No carry across the N-block axis -> shard it across TensorCores.
            dimension_semantics=("parallel", "arbitrary"),
        ),
        cost_estimate=cost,
    )(pred, gt, thr)

    per_thr_hits = jnp.sum(hits[:, 0, :], axis=0)            # [128]
    denom = jnp.float32(n)
    map50 = per_thr_hits[0] / denom
    map50_95 = jnp.sum(per_thr_hits[:_NUM_THR]) / (denom * _NUM_THR)
    return map50, map50_95


if __name__ == "__main__":
    key = jax.random.PRNGKey(0)
    k1, k2, k3, k4, k5, k6 = jax.random.split(key, 6)

    # small shapes consistent with the module (N masks of HxW)
    N, H, W = 8, 16, 16
    predicted_masks = jax.random.uniform(k1, (N, H, W), dtype=jnp.float32)
    ground_truth_masks = (
        predicted_masks + 0.2 * jax.random.normal(k2, (N, H, W)) > 0.5
    ).astype(jnp.float32)
    map50, map50_95 = map_metric(predicted_masks, ground_truth_masks)
    jax.block_until_ready((map50, map50_95))

    # second call: full-dim (non-128-multiple) HW block and full-dim N block
    N2, H2, W2 = 5, 20, 20
    pred2 = jax.random.uniform(k3, (N2, H2, W2), dtype=jnp.float32)
    gt2 = (pred2 + 0.2 * jax.random.normal(k4, (N2, H2, W2)) > 0.5).astype(jnp.float32)
    m50b, m5095b = map_metric(pred2, gt2)
    jax.block_until_ready((m50b, m5095b))

    # third call: force multiple HW blocks with a partial (lane-masked) last
    # block and a partial (row-masked) last N block, at tiny sizes
    N3, H3, W3 = 10, 20, 20
    pred3 = jax.random.uniform(k5, (N3, H3, W3), dtype=jnp.float32)
    gt3 = (pred3 + 0.2 * jax.random.normal(k6, (N3, H3, W3)) > 0.5).astype(jnp.float32)
    m50c, m5095c = map_metric(pred3, gt3, tile_n=8, block_budget_bytes=8 * 1024)
    jax.block_until_ready((m50c, m5095c))

    print("KERNEL_OK")
</pallas_src>

<mosaic_0001>
module attributes {stable_mosaic.version = 11 : i64} {
  func.func @_map_kernel(%arg0: i32, %arg1: i32, %arg2: memref<8x256xf32, #tpu.memory_space<vmem>>, %arg3: memref<8x256xf32, #tpu.memory_space<vmem>>, %arg4: memref<1x128xf32, #tpu.memory_space<vmem>>, %arg5: memref<1x8x128xf32, #tpu.memory_space<vmem>>, %arg6: memref<8x1xf32, #tpu.memory_space<vmem>>, %arg7: memref<8x1xf32, #tpu.memory_space<vmem>>) attributes {dimension_semantics = [#tpu.dimension_semantics<parallel>, #tpu.dimension_semantics<arbitrary>], iteration_bounds = array<i64: 1, 1>, scalar_prefetch = 0 : i64, scratch_operands = 2 : i64, tpu.core_type = #tpu.core_type<tc>, window_params = [{transform_indices = @transform_0, window_bounds = array<i64: 8, 256>}, {transform_indices = @transform_1, window_bounds = array<i64: 8, 256>}, {pipeline_mode = #tpu.pipeline_mode<synchronous>, transform_indices = @transform_2, window_bounds = array<i64: 1, 128>}, {transform_indices = @transform_3, window_bounds = array<i64: 1, 8, 128>}]} {
    %c0_i32 = arith.constant 0 : i32
    %0 = arith.cmpi eq, %arg1, %c0_i32 : i32
    %1 = arith.extui %0 : i1 to i32
    %c0_i32_0 = arith.constant 0 : i32
    %2 = arith.cmpi ne, %1, %c0_i32_0 : i32
    scf.if %2 {
      %cst_17 = arith.constant 0.000000e+00 : f32
      %28 = vector.broadcast %cst_17 : f32 to vector<8x1xf32>
      %c0_18 = arith.constant 0 : index
      %c0_19 = arith.constant 0 : index
      %29 = vector.load %arg6[%c0_18, %c0_19] : memref<8x1xf32, #tpu.memory_space<vmem>>, vector<8x1xf32>
      tpu.vector_store %arg6[%c0_18, %c0_19], %28 {strides = array<i32>} : memref<8x1xf32, #tpu.memory_space<vmem>>, vector<8x1xf32>,
      %cst_20 = arith.constant 0.000000e+00 : f32
      %30 = vector.broadcast %cst_20 : f32 to vector<8x1xf32>
      %c0_21 = arith.constant 0 : index
      %c0_22 = arith.constant 0 : index
      %31 = vector.load %arg7[%c0_21, %c0_22] : memref<8x1xf32, #tpu.memory_space<vmem>>, vector<8x1xf32>
      tpu.vector_store %arg7[%c0_21, %c0_22], %30 {strides = array<i32>} : memref<8x1xf32, #tpu.memory_space<vmem>>, vector<8x1xf32>,
    } else {
    }
    %c0 = arith.constant 0 : index
    %c0_1 = arith.constant 0 : index
    %3 = vector.load %arg2[%c0, %c0_1] : memref<8x256xf32, #tpu.memory_space<vmem>>, vector<8x256xf32>
    %cst = arith.constant 5.000000e-01 : f32
    %4 = vector.broadcast %cst : f32 to vector<8x256xf32>
    %5 = arith.cmpf oge, %3, %4 : vector<8x256xf32>
    %c0_2 = arith.constant 0 : index
    %c0_3 = arith.constant 0 : index
    %6 = vector.load %arg3[%c0_2, %c0_3] : memref<8x256xf32, #tpu.memory_space<vmem>>, vector<8x256xf32>
    %cst_4 = arith.constant 5.000000e-01 : f32
    %7 = vector.broadcast %cst_4 : f32 to vector<8x256xf32>
    %8 = arith.cmpf oge, %6, %7 : vector<8x256xf32>
    %c0_5 = arith.constant 0 : index
    %c0_6 = arith.constant 0 : index
    %9 = vector.load %arg6[%c0_5, %c0_6] : memref<8x1xf32, #tpu.memory_space<vmem>>, vector<8x1xf32>
    %10 = arith.andi %5, %8 : vector<8x256xi1>
    %11 = arith.extui %10 : vector<8x256xi1> to vector<8x256xi32>
    %12 = arith.sitofp %11 : vector<8x256xi32> to vector<8x256xf32>
    %cst_7 = arith.constant dense<0.000000e+00> : vector<8xf32>
    %13 = vector.multi_reduction <add>, %12, %cst_7 [1] : vector<8x256xf32> to vector<8xf32>
    %14 = vector.shape_cast %13 : vector<8xf32> to vector<8x1xf32>
    %15 = arith.addf %9, %14 : vector<8x1xf32>
    %c0_8 = arith.constant 0 : index
    %c0_9 = arith.constant 0 : index
    %16 = vector.load %arg6[%c0_8, %c0_9] : memref<8x1xf32, #tpu.memory_space<vmem>>, vector<8x1xf32>
    tpu.vector_store %arg6[%c0_8, %c0_9], %15 {strides = array<i32>} : memref<8x1xf32, #tpu.memory_space<vmem>>, vector<8x1xf32>,
    %c0_10 = arith.constant 0 : index
    %c0_11 = arith.constant 0 : index
    %17 = vector.load %arg7[%c0_10, %c0_11] : memref<8x1xf32, #tpu.memory_space<vmem>>, vector<8x1xf32>
    %18 = arith.ori %5, %8 : vector<8x256xi1>
    %19 = arith.extui %18 : vector<8x256xi1> to vector<8x256xi32>
    %20 = arith.sitofp %19 : vector<8x256xi32> to vector<8x256xf32>
    %cst_12 = arith.constant dense<0.000000e+00> : vector<8xf32>
    %21 = vector.multi_reduction <add>, %20, %cst_12 [1] : vector<8x256xf32> to vector<8xf32>
    %22 = vector.shape_cast %21 : vector<8xf32> to vector<8x1xf32>
    %23 = arith.addf %17, %22 : vector<8x1xf32>
    %c0_13 = arith.constant 0 : index
    %c0_14 = arith.constant 0 : index
    %24 = vector.load %arg7[%c0_13, %c0_14] : memref<8x1xf32, #tpu.memory_space<vmem>>, vector<8x1xf32>
    tpu.vector_store %arg7[%c0_13, %c0_14], %23 {strides = array<i32>} : memref<8x1xf32, #tpu.memory_space<vmem>>, vector<8x1xf32>,
    %c0_i32_15 = arith.constant 0 : i32
    %25 = arith.cmpi eq, %arg1, %c0_i32_15 : i32
    %26 = arith.extui %25 : i1 to i32
    %c0_i32_16 = arith.constant 0 : i32
    %27 = arith.cmpi ne, %26, %c0_i32_16 : i32
    scf.if %27 {
      %c0_17 = arith.constant 0 : index
      %c0_18 = arith.constant 0 : index
      %28 = vector.load %arg6[%c0_17, %c0_18] : memref<8x1xf32, #tpu.memory_space<vmem>>, vector<8x1xf32>
      %c0_19 = arith.constant 0 : index
      %c0_20 = arith.constant 0 : index
      %29 = vector.load %arg7[%c0_19, %c0_20] : memref<8x1xf32, #tpu.memory_space<vmem>>, vector<8x1xf32>
      %cst_21 = arith.constant 1.000000e-07 : f32
      %30 = vector.broadcast %cst_21 : f32 to vector<8x1xf32>
      %31 = arith.addf %28, %30 : vector<8x1xf32>
      %cst_22 = arith.constant 1.000000e-07 : f32
      %32 = vector.broadcast %cst_22 : f32 to vector<8x1xf32>
      %33 = arith.addf %29, %32 : vector<8x1xf32>
      %34 = arith.divf %31, %33 : vector<8x1xf32>
      %c8_i32 = arith.constant 8 : i32
      %35 = arith.muli %arg0, %c8_i32 : i32
      %36 = tpu.iota {dimensions = array<i32: 0>} : vector<8x1xi32>
      %37 = vector.broadcast %35 : i32 to vector<8x1xi32>
      %38 = arith.addi %37, %36 : vector<8x1xi32>
      %c8_i32_23 = arith.constant 8 : i32
      %39 = vector.broadcast %c8_i32_23 : i32 to vector<8x1xi32>
      %40 = arith.cmpi slt, %38, %39 : vector<8x1xi32>
      %c0_24 = arith.constant 0 : index
      %c0_25 = arith.constant 0 : index
      %41 = vector.load %arg4[%c0_24, %c0_25] : memref<1x128xf32, #tpu.memory_space<vmem>>, vector<1x128xf32>
      %42 = vector.broadcast %34 : vector<8x1xf32> to vector<8x128xf32>
      %43 = vector.broadcast %41 : vector<1x128xf32> to vector<8x128xf32>
      %44 = arith.cmpf oge, %42, %43 : vector<8x128xf32>
      %45 = vector.broadcast %40 : vector<8x1xi1> to vector<8x128xi1>
      %46 = arith.andi %45, %44 : vector<8x128xi1>
      %47 = arith.extui %46 : vector<8x128xi1> to vector<8x128xi32>
      %48 = arith.sitofp %47 : vector<8x128xi32> to vector<8x128xf32>
      %cst_26 = arith.constant dense<0.000000e+00> : vector<128xf32>
      %49 = vector.multi_reduction <add>, %48, %cst_26 [0] : vector<8x128xf32> to vector<128xf32>
      %50 = vector.shape_cast %49 : vector<128xf32> to vector<1x128xf32>
      %51 = vector.shape_cast %50 : vector<1x128xf32> to vector<1x1x128xf32>
      %52 = vector.shape_cast %51 : vector<1x1x128xf32> to vector<1x1x128xf32>
      %53 = vector.broadcast %52 : vector<1x1x128xf32> to vector<1x8x128xf32>
      %c0_27 = arith.constant 0 : index
      %c0_28 = arith.constant 0 : index
      %c0_29 = arith.constant 0 : index
      %54 = vector.load %arg5[%c0_27, %c0_28, %c0_29] : memref<1x8x128xf32, #tpu.memory_space<vmem>>, vector<1x8x128xf32>
      tpu.vector_store %arg5[%c0_27, %c0_28, %c0_29], %53 {strides = array<i32>} : memref<1x8x128xf32, #tpu.memory_space<vmem>>, vector<1x8x128xf32>,
    } else {
    }
    return
  }
  func.func @transform_0(%arg0: i32, %arg1: i32) -> (i32, i32) {
    %c0_i32 = arith.constant 0 : i32
    return %arg0, %arg1 : i32, i32
  }
  func.func @transform_1(%arg0: i32, %arg1: i32) -> (i32, i32) {
    %c0_i32 = arith.constant 0 : i32
    return %arg0, %arg1 : i32, i32
  }
  func.func @transform_2(%arg0: i32, %arg1: i32) -> (i32, i32) {
    %c0_i32 = arith.constant 0 : i32
    %c0_i32_0 = arith.constant 0 : i32
    %c0_i32_1 = arith.constant 0 : i32
    return %c0_i32, %c0_i32_0 : i32, i32
  }
  func.func @transform_3(%arg0: i32, %arg1: i32) -> (i32, i32, i32) {
    %c0_i32 = arith.constant 0 : i32
    %c0_i32_0 = arith.constant 0 : i32
    %c0_i32_1 = arith.constant 0 : i32
    return %arg0, %c0_i32, %c0_i32_0 : i32, i32, i32
  }
}

</mosaic_0001>

<llo_original>
// kernel: tpu_custom_call.1
$region0: #{tpu_custom_call.1}
  #allocation0 [shape = 'u32[]', space=smem, size = 0x4, offset = 0x4, fixed_abs, tag = 'smem constant byte address 0x4 - core index']
  #allocation1 [shape = 'u32[72,128]{1,0:T(1,128)}', space=vmem, size = 0x9000, scoped, tag = 'internal scratch']
  #allocation2 [shape = 'f32[8,1]{1,0:T(8,128)}', space=vmem, size = 0x1000, scoped, tag = 'scratch operand']
  #allocation3 [shape = 'f32[8,1]{1,0:T(8,128)}', space=vmem, size = 0x1000, scoped, tag = 'scratch operand']
  %s0 = inlined_call_operand.hbm [shape: f32[8,256], index: 0, kind: input, shape index: {}]
  %s1 = inlined_call_operand.hbm [shape: f32[8,256], index: 1, kind: input, shape index: {}]
  %s2 = inlined_call_operand.vmem [shape: f32[1,128], index: 2, kind: input, shape index: {}]
  %s3 = inlined_call_operand.hbm [shape: f32[1,8,128], index: 3, kind: output, shape index: {}]
  %s4 = sld [smem:[#allocation0]]
  $region38: #{tpu_custom_call.1} parent=0
    _
  %s6 = ssub.s32 1, %s4
  %s7 = scalar_select 0, %s6, %s4
  $region1: #{tpu_custom_call.1} parent=0
    #allocation4 [shape = 'u8[8192]{0}', space=vmem, size = 0x2000, scoped, tag = 'input window, operand 0, single buffered']
    #allocation5 [shape = 's32[1]{0}', space=sflag, size = 0x4, scoped, tag = 'scoped memory for tpu_custom_call.1']
    #allocation6 [shape = 's32[1]{0}', space=sflag, size = 0x4, scoped, tag = 'scoped memory for tpu_custom_call.1']
    #allocation7 [shape = 'u8[8192]{0}', space=vmem, size = 0x2000, scoped, tag = 'input window, operand 1, single buffered']
    #allocation8 [shape = 's32[1]{0}', space=sflag, size = 0x4, scoped, tag = 'scoped memory for tpu_custom_call.1']
    #allocation9 [shape = 'u8[4096]{0}', space=vmem, size = 0x1000, scoped, tag = 'output window, operand 0, single buffered']
    %8 = vsyncpa [#allocation5], 0
    %9 = vsyncpa [#allocation8], 0
    %10 = vsyncpa [#allocation6], 0
    // Predicated region
    $region2: #{tpu_custom_call.1} parent=1 // pred_check
      _
    $region3: #{tpu_custom_call.1} parent=1 // pred_check_branch
      %12 = sbr.rel (0) target = $region5
    $region4: #{tpu_custom_call.1} parent=1 // pred_region
      %14 = vsyncadd [#allocation5], 0
      %s16 = sshll.u32 %s0, 4
      %s17 = int_to_ptr.hbm [resolvable:$true] %s16
      %s18 = sshll.u32 [#allocation4], 4
      %s19 = int_to_ptr.vmem [resolvable:$true] %s18
      %21 = dma.hbm_to_vmem [thread:$0]  %s17, 256, %s19, [#allocation5]
    $region5: #{tpu_custom_call.1} parent=1 // pred_fallthru
      _
    // Predicated region
    $region6: #{tpu_custom_call.1} parent=1 // pred_check
      _
    $region7: #{tpu_custom_call.1} parent=1 // pred_check_branch
      %23 = sbr.rel (0) target = $region9
    $region8: #{tpu_custom_call.1} parent=1 // pred_region
      %25 = vsyncadd [#allocation8], 0
      %s27 = sshll.u32 %s1, 4
      %s28 = int_to_ptr.hbm [resolvable:$true] %s27
      %s29 = sshll.u32 [#allocation7], 4
      %s30 = int_to_ptr.vmem [resolvable:$true] %s29
      %32 = dma.hbm_to_vmem [thread:$0]  %s28, 256, %s30, [#allocation8]
    $region9: #{tpu_custom_call.1} parent=1 // pred_fallthru
      _
    // Predicated region
    $region10: #{tpu_custom_call.1} parent=1 // pred_check
      _
    $region11: #{tpu_custom_call.1} parent=1 // pred_check_branch
      %34 = sbr.rel (0) target = $region13
    $region12: #{tpu_custom_call.1} parent=1 // pred_region
      _
    $region13: #{tpu_custom_call.1} parent=1 // pred_fallthru
      _
    // Predicated region
    $region14: #{tpu_custom_call.1} parent=1 // pred_check
      _
    $region15: #{tpu_custom_call.1} parent=1 // pred_check_branch
      %36 = sbr.rel (0) target = $region17
    $region16: #{tpu_custom_call.1} parent=1 // pred_region
      %38 = dma.done [#allocation5], 256
    $region17: #{tpu_custom_call.1} parent=1 // pred_fallthru
      _
    // Predicated region
    $region18: #{tpu_custom_call.1} parent=1 // pred_check
      _
    $region19: #{tpu_custom_call.1} parent=1 // pred_check_branch
      %40 = sbr.rel (0) target = $region21
    $region20: #{tpu_custom_call.1} parent=1 // pred_region
      %42 = dma.done [#allocation8], 256
    $region21: #{tpu_custom_call.1} parent=1 // pred_fallthru
      _
    %p43 = scmp.eq.s32.totalorder 0, 0
    // Predicated region
    $region22: #{tpu_custom_call.1} parent=1 // pred_check
      %p44 = pneg %p43
    $region23: #{tpu_custom_call.1} parent=1 // pred_check_branch
      %46 = sbr.rel (%p44) target = $region25
    $region24: #{tpu_custom_call.1} parent=1 // pred_region
      %vm47 = vcmask 7168
      %48 = vst.msk [vmem:[#allocation2] sm:$0xff] %vm47, 0.0
      %49 = vst.msk [vmem:[#allocation3] sm:$0xff] %vm47, 0.0
    $region25: #{tpu_custom_call.1} parent=1 // pred_fallthru
      _
    %v50 = vld [vmem:[#allocation4] sm:$0xff]
    %v51 = vld [vmem:[#allocation4 + $0x8] sm:$0xff]
    %vm52 = vcmp.ge.f32.partialorder %v50, 0.5
    %vm53 = vcmp.ge.f32.partialorder %v51, 0.5
    %v54 = vld [vmem:[#allocation7] sm:$0xff]
    %v55 = vld [vmem:[#allocation7 + $0x8] sm:$0xff]
    %vm56 = vcmp.ge.f32.partialorder %v54, 0.5
    %vm57 = vcmp.ge.f32.partialorder %v55, 0.5
    %v58 = vld [vmem:[#allocation2] sm:$0xff]
    %vm59 = vmand %vm52, %vm56
    %vm60 = vmand %vm53, %vm57
    %v61 = vsel %vm59, 1, 0
    %v62 = vsel %vm60, 1, 0
    %v63 = vcvt.s32.f32 %v61
    %v64 = vcvt.s32.f32 %v62
    %v65 = vadd.f32 %v63, %v64
    %66 = vadd.xlane.f32.xlu0 %v65
    %v67 = vpop.xlane.xlu0 %66
    %v68 = vadd.f32 %v58, %v67
    %vm69 = vcmask 7168
    %70 = vst.msk [vmem:[#allocation2] sm:$0xff] %vm69, %v68
    %v71 = vld [vmem:[#allocation3] sm:$0xff]
    %vm72 = vmor %vm52, %vm56
    %vm73 = vmor %vm53, %vm57
    %v74 = vsel %vm72, 1, 0
    %v75 = vsel %vm73, 1, 0
    %v76 = vcvt.s32.f32 %v74
    %v77 = vcvt.s32.f32 %v75
    %v78 = vadd.f32 %v76, %v77
    %79 = vadd.xlane.f32.xlu0 %v78
    %v80 = vpop.xlane.xlu0 %79
    %v81 = vadd.f32 %v71, %v80
    %82 = vst.msk [vmem:[#allocation3] sm:$0xff] %vm69, %v81
    // Predicated region
    $region26: #{tpu_custom_call.1} parent=1 // pred_check
      %p83 = pneg %p43
    $region27: #{tpu_custom_call.1} parent=1 // pred_check_branch
      %85 = sbr.rel (%p83) target = $region29
    $region28: #{tpu_custom_call.1} parent=1 // pred_region
      %v86 = vld [vmem:[#allocation2] sm:$0xff]
      %v87 = vld [vmem:[#allocation3] sm:$0xff]
      %v88 = vadd.f32 %v86, 1e-07
      %v89 = vadd.f32 %v87, 1e-07
      %v90 = vrcp.pop %v89
      %v91 = vmul.f32 %v89, %v90
      %v92 = vsub.f32 1.0, %v91
      %v93 = vmul.f32 %v90, %v92
      %v94 = vadd.f32 %v90, %v93
      %vm95 = vweird.f32 %v89
      %vm96 = vweird.f32 %v90
      %vm97 = vmor %vm95, %vm96
      %v98 = vsel %vm97, %v90, %v94
      %v99 = vand.u32 2147483647, %v89
      %vm100 = vcmp.eq.f32.partialorder %v99, 8.507059e+37
      %v101 = vand.u32 %v89, 2147483648
      %v102 = vor.u32 1.1754944e-38, %v101
      %v103 = vsel %vm100, %v102, %v98
      %v104 = vmul.f32 %v88, %v103
      %s105 = smul.u32 0, 8
      %v106 = vlaneseq
      %v107 = vshrl.u32 %v106, 7
      %v108 = vstv %s105
      %v109 = vadd.s32 %v108, %v107
      %vm110 = vcmp.lt.s32.totalorder %v109, 8
      %v111 = vld [vmem:[%s2] sm:$0x1]
      %113 = vset.pattern.permute.xlu0 0
      %114 = vperm.xlu0 %113, %v104
      %v115 = vpop.permute.xlu0 %114
      %v118 = vperm.slane %v111, 0
      %vm120 = vcmp.ge.f32.partialorder %v115, %v118
      %v121 = vsel %vm110, 1, 0
      %vm122 = vcmp.eq.s32.totalorder %v121, 1
      %vm123 = vmand %vm122, %vm120
      %v124 = vsel %vm123, 1, 0
      %v125 = vcvt.s32.f32 %v124
      %v126 = vrot.slane %v125, 4
      %v127 = vadd.f32 %v125, %v126
      %v128 = vrot.slane %v127, 2
      %v129 = vadd.f32 %v127, %v128
      %v130 = vrot.slane %v129, 1
      %v131 = vadd.f32 %v129, %v130
      %132 = vst [vmem:[#allocation9] sm:$0xff] %v131
    $region29: #{tpu_custom_call.1} parent=1 // pred_fallthru
      _
    // Predicated region
    $region30: #{tpu_custom_call.1} parent=1 // pred_check
      _
    $region31: #{tpu_custom_call.1} parent=1 // pred_check_branch
      %134 = sbr.rel (0) target = $region33
    $region32: #{tpu_custom_call.1} parent=1 // pred_region
      %136 = vsyncadd [#allocation6], 0
      %s138 = sshll.u32 [#allocation9], 4
      %s139 = int_to_ptr.vmem [resolvable:$true] %s138
      %s140 = sshll.u32 %s3, 4
      %s141 = int_to_ptr.hbm [resolvable:$true] %s140
      %143 = dma.vmem_to_hbm [thread:$0]  %s139, 128, %s141, [#allocation6]
    $region33: #{tpu_custom_call.1} parent=1 // pred_fallthru
      _
    // Predicated region
    $region34: #{tpu_custom_call.1} parent=1 // pred_check
      _
    $region35: #{tpu_custom_call.1} parent=1 // pred_check_branch
      %145 = sbr.rel (0) target = $region37
    $region36: #{tpu_custom_call.1} parent=1 // pred_region
      %147 = dma.done [#allocation6], 128
    $region37: #{tpu_custom_call.1} parent=1 // pred_fallthru
      _
    %148 = vsyncpa [#allocation5], 1
    %149 = vsyncpa [#allocation8], 1
    %150 = vsyncpa [#allocation6], 1

</llo_original>
